<compile_context>
chip_gen: v5e
topology: v5e:2x2
jax: 0.10.0
libtpu: 0.0.40
codegen_flags: <defaults>
</compile_context>

<pallas_src>
import numpy as np
import jax
import jax.numpy as jnp
from jax.experimental import pallas as pl
from jax.experimental.pallas import tpu as pltpu


# --------------------------------------------------------------------------- #
# Kernel
# --------------------------------------------------------------------------- #
def _causal_conv_kernel(xb_ref, xh_ref, w_ref, b_ref, o_ref):
    """One (batch, row-tile) grid step.

    xb_ref : [tile_h, Wp, C_in]    body rows of the padded input
    xh_ref : [ph, Wp, C_in]        halo rows (the next ph padded rows)
    w_ref  : [K, C_out_p]          folded, masked weights (K = kh*kw*C_in)
    b_ref  : [1, C_out_p]          bias (zero-padded to C_out_p lanes)
    o_ref  : [tile_h, W, C_out_p]  output tile (lane-dense last dim)
    """
    tile_h, W, C_out_p = o_ref.shape
    ph, Wp, C_in = xh_ref.shape
    kh = ph + 1
    kw = Wp - W + 1
    R = tile_h * W

    # Load each input window once; every tap below is a register-level slice of
    # these values (no stitch scratch, no im2col scratch, no strip stores).
    xb = xb_ref[...]
    xh = xh_ref[...]

    # im2col built as a value: row-tap i uses rows body[i:] ++ halo[:i];
    # each (i, j) tap becomes an [R, C_in] slab, slabs are folded along the
    # lane axis into one [R, K] patch and consumed by a single MXU matmul.
    slabs = []
    for i in range(kh):
        rows = xb if i == 0 else jnp.concatenate([xb[i:], xh[:i]], axis=0)
        for j in range(kw):
            slabs.append(rows[:, j:j + W, :].reshape(R, C_in))
    patch = jnp.concatenate(slabs, axis=-1)                      # [R, K]

    acc = jnp.dot(patch, w_ref[...], preferred_element_type=jnp.float32)
    acc = acc + b_ref[...]                                       # + [1, C_out_p]
    o_ref[...] = acc.reshape(tile_h, W, C_out_p).astype(o_ref.dtype)


# --------------------------------------------------------------------------- #
# VMEM-budgeted row-tile selection (layout-padding and generation aware)
# --------------------------------------------------------------------------- #
def _round_up(x, m):
    return ((x + m - 1) // m) * m


def _sublanes(nbytes):
    return {1: 32, 2: 16, 4: 8}.get(nbytes, 8)


def _padded_bytes(shape, nbytes):
    """Bytes of a VMEM buffer after TPU layout padding (last dim -> 128 lanes,
    second-minor dim -> 8/16/32 sublanes depending on dtype width)."""
    dims = list(shape)
    dims[-1] = _round_up(dims[-1], 128)
    if len(dims) >= 2:
        dims[-2] = _round_up(dims[-2], _sublanes(nbytes))
    size = nbytes
    for d in dims:
        size *= d
    return size


def _vmem_budget_and_limit():
    """Target ~45% of physical VMEM for the pipeline footprint and set the
    scoped limit to ~75% (v5e/v6e: 128 MiB physical, v7x: 64 MiB per TC)."""
    try:
        cap = int(pltpu.get_tpu_info().vmem_capacity_bytes)
    except Exception:
        cap = 64 * 1024 * 1024          # conservative fallback (fits all gens)
    return (cap * 45) // 100, (cap * 3) // 4


def _pick_tile_h(H, ph, W, Wp, C_in, C_out_p, K, in_b, out_b, budget):
    """Largest row tile that is a multiple of ph (halo block alignment),
    preferably divides H (no wasted bottom rows), and whose double-buffered
    layout-padded footprint (plus patch/accumulator values) fits `budget`."""
    H_u = _round_up(H, ph)

    def est(th):
        R = th * W
        io = (_padded_bytes((th, Wp, C_in), in_b)          # body block
              + _padded_bytes((ph, Wp, C_in), in_b)        # halo block
              + _padded_bytes((th, W, C_out_p), out_b))    # output block
        params = (_padded_bytes((K, C_out_p), in_b)        # folded weights
                  + _padded_bytes((1, C_out_p), 4))        # bias
        # compiler-managed values (im2col patch + f32 accumulator) may spill
        values = _padded_bytes((R, K), in_b) + _padded_bytes((R, C_out_p), 4)
        return 2 * (io + params) + values                  # 2x: double buffering

    best_div, best_any = ph, ph
    th = ph
    while th <= H_u:
        if est(th) > budget:
            break
        best_any = th
        if H_u % th == 0:
            best_div = th
        th += ph
    # Prefer a tile that divides H unless it costs us >2x in tile size.
    return best_div if best_div * 2 >= best_any else best_any


# --------------------------------------------------------------------------- #
# Wrappers
# --------------------------------------------------------------------------- #
def make_causal_conv_params(key, dim_in, dim_out, kernel_size, mask_present):
    """Deterministic parameter init matching CausalConv.__init__ shapes/scaling."""
    assert kernel_size % 2 == 1
    kh = kernel_size // 2 + 1
    kw = kernel_size
    weight = jax.random.normal(key, (dim_out, dim_in, kh, kw), dtype=jnp.float32)
    weight = weight / float(np.sqrt(kernel_size ** 2 * dim_in))
    bias = jnp.zeros((dim_out,), dtype=jnp.float32)
    mask = np.ones((dim_out, dim_in, kh, kw), dtype=np.float32)
    if mask_present:
        mask[:, :, -1, kernel_size // 2:] = 0.0
    else:
        mask[:, :, -1, kernel_size // 2 + 1:] = 0.0
    return weight, bias, jnp.asarray(mask)


def causal_conv_forward_nhwc(x_nhwc, weight, bias, mask, kernel_size, *,
                             compute_dtype=jnp.float32, tile_h=None):
    """NHWC entry point (no layout transposes): x_nhwc [N,H,W,C_in] -> [N,H,W,C_out]."""
    # TODO(synk): kernel_size == 1 makes the original module's crop x[..., :-0, :]
    # degenerate (empty output); we require odd kernel_size >= 3 like real PixelCNN.
    assert kernel_size % 2 == 1 and kernel_size >= 3
    ph = pw = kernel_size // 2
    kh, kw = ph + 1, kernel_size
    N, H, W, C_in = x_nhwc.shape
    C_out = weight.shape[0]
    K = kh * kw * C_in
    Wp = W + 2 * pw

    LANES = 128
    C_out_p = pl.cdiv(C_out, LANES) * LANES          # lane-dense output width
    in_b = jnp.dtype(compute_dtype).itemsize
    out_b = jnp.dtype(x_nhwc.dtype).itemsize

    # ---- parameters: mask, fold taps into [K, C_out], pad C_out lanes ----
    w_masked = (weight * mask).astype(compute_dtype)             # [C_out,C_in,kh,kw]
    w_folded = jnp.transpose(w_masked, (2, 3, 1, 0)).reshape(K, C_out)
    w_folded = jnp.pad(w_folded, ((0, 0), (0, C_out_p - C_out)))
    b2d = jnp.pad(bias.astype(jnp.float32).reshape(1, C_out),
                  ((0, 0), (0, C_out_p - C_out)))

    # ---- row-tile choice (multiple of ph; padding/generation-aware budget) ----
    budget, vmem_limit = _vmem_budget_and_limit()
    if tile_h is None:
        tile_h = _pick_tile_h(H, ph, W, Wp, C_in, C_out_p, K, in_b, out_b, budget)
    tile_h = max(ph, (tile_h // ph) * ph)
    tile_h = min(tile_h, _round_up(H, ph))
    n_tiles = pl.cdiv(H, tile_h)
    H_pad = n_tiles * tile_h                         # bottom-pad so tiles divide H
    hb = tile_h // ph                                # halo blocks (ph rows) per tile

    # Causal pad: top-only along H (plus divisibility pad), symmetric along W.
    # (jnp.pad fuses with the caller-side cast; one materialization of x.)
    x_pad = jnp.pad(x_nhwc.astype(compute_dtype),
                    ((0, 0), (ph, H_pad - H), (pw, pw), (0, 0)))
    # x_pad: [N, H_pad + ph, Wp, C_in]

    out = pl.pallas_call(
        _causal_conv_kernel,
        out_shape=jax.ShapeDtypeStruct((N, H_pad, W, C_out_p), x_nhwc.dtype),
        grid=(N, n_tiles),
        in_specs=[
            # body: padded rows [t*tile_h, (t+1)*tile_h)
            pl.BlockSpec((None, tile_h, Wp, C_in), lambda n, t: (n, t, 0, 0)),
            # halo: the next ph padded rows (block-aligned since ph | tile_h)
            pl.BlockSpec((None, ph, Wp, C_in),
                         lambda n, t: (n, (t + 1) * hb, 0, 0)),
            # weights / bias: constant block index -> fetched once, kept resident
            pl.BlockSpec((K, C_out_p), lambda n, t: (0, 0)),
            pl.BlockSpec((1, C_out_p), lambda n, t: (0, 0)),
        ],
        out_specs=pl.BlockSpec((None, tile_h, W, C_out_p),
                               lambda n, t: (n, t, 0, 0)),
        compiler_params=pltpu.CompilerParams(
            dimension_semantics=("parallel", "parallel"),
            vmem_limit_bytes=vmem_limit),
    )(x_pad, x_pad, w_folded, b2d)

    return out[:, :H, :, :C_out]                     # drop H padding + lane padding


def causal_conv_forward(x_nchw, weight, bias, mask, kernel_size, *,
                        compute_dtype=jnp.float32, tile_h=None):
    """PyTorch-faithful NCHW interface; prefer causal_conv_forward_nhwc when the
    surrounding model already carries NHWC (avoids two HBM transpose round trips)."""
    x_nhwc = jnp.transpose(x_nchw, (0, 2, 3, 1))
    out = causal_conv_forward_nhwc(x_nhwc, weight, bias, mask, kernel_size,
                                   compute_dtype=compute_dtype, tile_h=tile_h)
    return jnp.transpose(out, (0, 3, 1, 2))          # NHWC -> NCHW


def causal_conv_reference(x_nchw, weight, bias, mask, kernel_size):
    """Plain-JAX reference mirroring the PyTorch forward exactly."""
    ph = kernel_size // 2
    w_masked = weight * mask
    out = jax.lax.conv_general_dilated(
        x_nchw, w_masked,
        window_strides=(1, 1),
        padding=((ph, ph), (ph, ph)),
        dimension_numbers=('NCHW', 'OIHW', 'NCHW'))
    out = out + bias[None, :, None, None]
    out = out[:, :, :-ph, :]
    return out


if __name__ == "__main__":
    key = jax.random.PRNGKey(0)
    k_w, k_x = jax.random.split(key)

    N, C_in, H, W = 2, 4, 16, 16
    C_out, kernel_size = 8, 3
    mask_present = True

    weight, bias, mask = make_causal_conv_params(
        k_w, C_in, C_out, kernel_size, mask_present)
    x = jax.random.normal(k_x, (N, C_in, H, W), dtype=jnp.float32)

    out = causal_conv_forward(x, weight, bias, mask, kernel_size)
    out = jax.block_until_ready(out)

    ref = causal_conv_reference(x, weight, bias, mask, kernel_size)
    np.testing.assert_allclose(np.asarray(out), np.asarray(ref),
                               rtol=1e-4, atol=1e-5)
    print("KERNEL_OK")
</pallas_src>

<mosaic_0001>
module attributes {stable_mosaic.version = 11 : i64} {
  func.func @_causal_conv_kernel(%arg0: i32, %arg1: i32, %arg2: memref<1x16x18x4xf32, #tpu.memory_space<vmem>>, %arg3: memref<1x1x18x4xf32, #tpu.memory_space<vmem>>, %arg4: memref<24x128xf32, #tpu.memory_space<vmem>>, %arg5: memref<1x128xf32, #tpu.memory_space<vmem>>, %arg6: memref<1x16x16x128xf32, #tpu.memory_space<vmem>>) attributes {dimension_semantics = [#tpu.dimension_semantics<parallel>, #tpu.dimension_semantics<parallel>], iteration_bounds = array<i64: 2, 1>, scalar_prefetch = 0 : i64, scratch_operands = 0 : i64, tpu.core_type = #tpu.core_type<tc>, window_params = [{transform_indices = @transform_0, window_bounds = array<i64: 1, 16, 18, 4>}, {transform_indices = @transform_1, window_bounds = array<i64: 1, 1, 18, 4>}, {pipeline_mode = #tpu.pipeline_mode<synchronous>, transform_indices = @transform_2, window_bounds = array<i64: 24, 128>}, {pipeline_mode = #tpu.pipeline_mode<synchronous>, transform_indices = @transform_3, window_bounds = array<i64: 1, 128>}, {transform_indices = @transform_4, window_bounds = array<i64: 1, 16, 16, 128>}]} {
    %c0 = arith.constant 0 : index
    %c0_0 = arith.constant 0 : index
    %c0_1 = arith.constant 0 : index
    %c0_2 = arith.constant 0 : index
    %0 = vector.load %arg2[%c0, %c0_0, %c0_1, %c0_2] : memref<1x16x18x4xf32, #tpu.memory_space<vmem>>, vector<1x16x18x4xf32>
    %1 = vector.shape_cast %0 : vector<1x16x18x4xf32> to vector<16x18x4xf32>
    %c0_3 = arith.constant 0 : index
    %c0_4 = arith.constant 0 : index
    %c0_5 = arith.constant 0 : index
    %c0_6 = arith.constant 0 : index
    %2 = vector.load %arg3[%c0_3, %c0_4, %c0_5, %c0_6] : memref<1x1x18x4xf32, #tpu.memory_space<vmem>>, vector<1x1x18x4xf32>
    %3 = vector.shape_cast %2 : vector<1x1x18x4xf32> to vector<1x18x4xf32>
    %4 = vector.extract_strided_slice %1 {offsets = [0, 0, 0], sizes = [16, 16, 4], strides = [1, 1, 1]} : vector<16x18x4xf32> to vector<16x16x4xf32>
    %5 = vector.shape_cast %4 : vector<16x16x4xf32> to vector<256x4xf32>
    %6 = vector.extract_strided_slice %1 {offsets = [0, 1, 0], sizes = [16, 16, 4], strides = [1, 1, 1]} : vector<16x18x4xf32> to vector<16x16x4xf32>
    %7 = vector.shape_cast %6 : vector<16x16x4xf32> to vector<256x4xf32>
    %8 = vector.extract_strided_slice %1 {offsets = [0, 2, 0], sizes = [16, 16, 4], strides = [1, 1, 1]} : vector<16x18x4xf32> to vector<16x16x4xf32>
    %9 = vector.shape_cast %8 : vector<16x16x4xf32> to vector<256x4xf32>
    %10 = vector.extract_strided_slice %1 {offsets = [1, 0, 0], sizes = [15, 18, 4], strides = [1, 1, 1]} : vector<16x18x4xf32> to vector<15x18x4xf32>
    %11 = tpu.concatenate %10, %3 in 0 : vector<15x18x4xf32>, vector<1x18x4xf32> -> vector<16x18x4xf32>
    %12 = vector.extract_strided_slice %11 {offsets = [0, 0, 0], sizes = [16, 16, 4], strides = [1, 1, 1]} : vector<16x18x4xf32> to vector<16x16x4xf32>
    %13 = vector.shape_cast %12 : vector<16x16x4xf32> to vector<256x4xf32>
    %14 = vector.extract_strided_slice %11 {offsets = [0, 1, 0], sizes = [16, 16, 4], strides = [1, 1, 1]} : vector<16x18x4xf32> to vector<16x16x4xf32>
    %15 = vector.shape_cast %14 : vector<16x16x4xf32> to vector<256x4xf32>
    %16 = vector.extract_strided_slice %11 {offsets = [0, 2, 0], sizes = [16, 16, 4], strides = [1, 1, 1]} : vector<16x18x4xf32> to vector<16x16x4xf32>
    %17 = vector.shape_cast %16 : vector<16x16x4xf32> to vector<256x4xf32>
    %18 = tpu.concatenate %5, %7, %9, %13, %15, %17 in 1 : vector<256x4xf32>, vector<256x4xf32>, vector<256x4xf32>, vector<256x4xf32>, vector<256x4xf32>, vector<256x4xf32> -> vector<256x24xf32>
    %c0_7 = arith.constant 0 : index
    %c0_8 = arith.constant 0 : index
    %19 = vector.load %arg4[%c0_7, %c0_8] : memref<24x128xf32, #tpu.memory_space<vmem>>, vector<24x128xf32>
    %cst = arith.constant dense<0.000000e+00> : vector<256x128xf32>
    %20 = tpu.matmul %18, %19, %cst {dimension_numbers = #tpu.dot_dimension_numbers<[1], [0], [0], [1], [0, 0, 1, 1], [], []>} : vector<256x24xf32>, vector<24x128xf32>, vector<256x128xf32> -> vector<256x128xf32>
    %c0_9 = arith.constant 0 : index
    %c0_10 = arith.constant 0 : index
    %21 = vector.load %arg5[%c0_9, %c0_10] : memref<1x128xf32, #tpu.memory_space<vmem>>, vector<1x128xf32>
    %22 = vector.broadcast %21 : vector<1x128xf32> to vector<256x128xf32>
    %23 = arith.addf %20, %22 : vector<256x128xf32>
    %24 = vector.shape_cast %23 : vector<256x128xf32> to vector<16x16x128xf32>
    %c0_11 = arith.constant 0 : index
    %c0_12 = arith.constant 0 : index
    %c0_13 = arith.constant 0 : index
    %c0_14 = arith.constant 0 : index
    %25 = vector.load %arg6[%c0_11, %c0_12, %c0_13, %c0_14] : memref<1x16x16x128xf32, #tpu.memory_space<vmem>>, vector<1x16x16x128xf32>
    %26 = vector.shape_cast %25 : vector<1x16x16x128xf32> to vector<16x16x128xf32>
    %27 = vector.shape_cast %24 : vector<16x16x128xf32> to vector<1x16x16x128xf32>
    tpu.vector_store %arg6[%c0_11, %c0_12, %c0_13, %c0_14], %27 {strides = array<i32>} : memref<1x16x16x128xf32, #tpu.memory_space<vmem>>, vector<1x16x16x128xf32>,
    return
  }
  func.func @transform_0(%arg0: i32, %arg1: i32) -> (i32, i32, i32, i32) {
    %c0_i32 = arith.constant 0 : i32
    %c0_i32_0 = arith.constant 0 : i32
    %c0_i32_1 = arith.constant 0 : i32
    return %arg0, %arg1, %c0_i32, %c0_i32_0 : i32, i32, i32, i32
  }
  func.func @transform_1(%arg0: i32, %arg1: i32) -> (i32, i32, i32, i32) {
    %c1_i32 = arith.constant 1 : i32
    %0 = arith.addi %arg1, %c1_i32 : i32
    %c16_i32 = arith.constant 16 : i32
    %1 = arith.muli %0, %c16_i32 : i32
    %c0_i32 = arith.constant 0 : i32
    %c0_i32_0 = arith.constant 0 : i32
    %c0_i32_1 = arith.constant 0 : i32
    return %arg0, %1, %c0_i32, %c0_i32_0 : i32, i32, i32, i32
  }
  func.func @transform_2(%arg0: i32, %arg1: i32) -> (i32, i32) {
    %c0_i32 = arith.constant 0 : i32
    %c0_i32_0 = arith.constant 0 : i32
    %c0_i32_1 = arith.constant 0 : i32
    return %c0_i32, %c0_i32_0 : i32, i32
  }
  func.func @transform_3(%arg0: i32, %arg1: i32) -> (i32, i32) {
    %c0_i32 = arith.constant 0 : i32
    %c0_i32_0 = arith.constant 0 : i32
    %c0_i32_1 = arith.constant 0 : i32
    return %c0_i32, %c0_i32_0 : i32, i32
  }
  func.func @transform_4(%arg0: i32, %arg1: i32) -> (i32, i32, i32, i32) {
    %c0_i32 = arith.constant 0 : i32
    %c0_i32_0 = arith.constant 0 : i32
    %c0_i32_1 = arith.constant 0 : i32
    return %arg0, %arg1, %c0_i32, %c0_i32_0 : i32, i32, i32, i32
  }
}

</mosaic_0001>

<llo_original>
// kernel: tpu_custom_call.1
$region0: #{tpu_custom_call.1}
  #allocation0 [shape = 'u32[]', space=smem, size = 0x4, offset = 0x4, fixed_abs, tag = 'smem constant byte address 0x4 - core index']
  #allocation1 [shape = 'u32[72,128]{1,0:T(1,128)}', space=vmem, size = 0x9000, scoped, tag = 'internal scratch']
  %s0 = inlined_call_operand.vmem [shape: f32[2,17,18,4], index: 0, kind: input, shape index: {}]
  %s1 = inlined_call_operand.vmem [shape: f32[2,17,18,4], index: 1, kind: input, shape index: {}]
  %s2 = inlined_call_operand.vmem [shape: f32[24,128], index: 2, kind: input, shape index: {}]
  %s3 = inlined_call_operand.vmem [shape: f32[1,128], index: 3, kind: input, shape index: {}]
  %s4 = inlined_call_operand.hbm [shape: f32[2,16,16,128], index: 4, kind: output, shape index: {}]
  %s5 = sld [smem:[#allocation0]]
  $region49: #{tpu_custom_call.1} parent=0
    _
  %s7 = ssub.s32 1, %s5
  %s8 = scalar_select 0, %s7, %s5
  $region1: #{tpu_custom_call.1} parent=0
    #allocation2 [shape = 'u8[262144]{0}', space=vmem, size = 0x40000, scoped, tag = 'output window, operand 0']
    #allocation3 [shape = 's32[2]{0}', space=sflag, size = 0x8, scoped, tag = 'scoped memory for tpu_custom_call.1']
    %9 = vsyncpa [#allocation3], 0
    %s10 = scalar_lea.sflag [#allocation3], 1
    %11 = vsyncpa %s10, 0
    loop: start=0, step=1, limit=4
    $region2: #{tpu_custom_call.1} parent=1 // loop_pre_header
      _
    $region3: #{tpu_custom_call.1} parent=1 // loop_header
      %s13 = sphi 0, %s17
      %p14 = scmp.ge.s32.totalorder %s13, 4
      %s20 = sphi 0, %s32
      %s21 = sphi 0, %s28
      %s22 = sphi 0, %s20
      %s23 = sphi 0, %s21
      %s24 = sphi 0, %s22
      %s25 = sphi 0, %s23
      %s37 = sphi 0, %s39
      %s40 = sphi 0, %s37
      %s41 = sphi 0, %s40
      %s57 = sphi 0, %s41
      %s69 = sphi 0, %s71
      %s72 = sphi 0, %s69
      %s73 = sphi 0, %s72
      %s89 = sphi 0, %s73
      %s93 = sphi 0, %s93
      %s95 = sphi 0, %s93
      %s96 = sphi 0, %s95
      %s110 = sphi 0, %s96
      %s114 = sphi 0, %s114
      %s116 = sphi 0, %s114
      %s117 = sphi 0, %s116
      %s131 = sphi 0, %s117
      %s139 = sphi 0, %s141
      %s142 = sphi 0, %s139
      %s143 = sphi 0, %s142
      %s159 = sphi 0, %s143
    $region4: #{tpu_custom_call.1} parent=1 // loop_header_branch
      %16 = sbr.rel (%p14) target = $region8
    $region5: #{tpu_custom_call.1} parent=1 // loop_body
      %s18 = ssub.s32 %s13, 1
      %s19 = ssub.s32 %s13, 2
      %s26 = sadd.s32 1, %s21
      %p27 = scmp.ge.s32.totalorder %s26, 1
      %s28 = scalar_select %p27, 0, %s26
      %s29 = sadd.s32 1, %s20
      %s30 = scalar_select %p27, %s29, %s20
      %p31 = scmp.ge.s32.totalorder %s30, 2
      %s32 = scalar_select %p31, 0, %s30
      %s33 = ssub.s32 %s20, %s32
      %s34 = ssub.s32 %s21, %s28
      %s35 = sor.u32 %s33, %s34
      %p36 = scmp.eq.s32.totalorder %s35, 0
      %s38 = sadd.s32 %s37, 1
      %s39 = scalar_select %p36, %s37, %s38
      %p42 = pneg %p36
      %p43 = scmp.eq.s32.totalorder %s13, 1
      %p44 = por %p42, %p43
      %p45 = scmp.ne.s32.totalorder %s37, %s40
      %p46 = scmp.eq.s32.totalorder %s13, 0
      %p47 = por %p45, %p46
      %p48 = scmp.ne.s32.totalorder %s37, %s40
      %p49 = scmp.eq.s32.totalorder %s18, 1
      %p50 = por %p48, %p49
      %p51 = scmp.ne.s32.totalorder %s40, %s41
      %p52 = scmp.eq.s32.totalorder %s18, 0
      %p53 = por %p51, %p52
      %p54 = scmp.ne.s32.totalorder %s40, %s41
      %p55 = scmp.eq.s32.totalorder %s19, 1
      %p56 = por %p54, %p55
      %p58 = scmp.ne.s32.totalorder %s41, %s57
      %p59 = scmp.eq.s32.totalorder %s19, 0
      %p60 = por %p58, %p59
      %s61 = sadd.s32 %s21, 1
      %s62 = smul.u32 %s61, 16
      %s63 = sadd.s32 %s28, 1
      %s64 = smul.u32 %s63, 16
      %s65 = ssub.s32 %s20, %s32
      %s66 = ssub.s32 %s62, %s64
      %s67 = sor.u32 %s65, %s66
      %p68 = scmp.eq.s32.totalorder %s67, 0
      %s70 = sadd.s32 %s69, 1
      %s71 = scalar_select %p68, %s69, %s70
      %p74 = pneg %p68
      %p75 = scmp.eq.s32.totalorder %s13, 1
      %p76 = por %p74, %p75
      %p77 = scmp.ne.s32.totalorder %s69, %s72
      %p78 = scmp.eq.s32.totalorder %s13, 0
      %p79 = por %p77, %p78
      %p80 = scmp.ne.s32.totalorder %s69, %s72
      %p81 = scmp.eq.s32.totalorder %s18, 1
      %p82 = por %p80, %p81
      %p83 = scmp.ne.s32.totalorder %s72, %s73
      %p84 = scmp.eq.s32.totalorder %s18, 0
      %p85 = por %p83, %p84
      %p86 = scmp.ne.s32.totalorder %s72, %s73
      %p87 = scmp.eq.s32.totalorder %s19, 1
      %p88 = por %p86, %p87
      %p90 = scmp.ne.s32.totalorder %s73, %s89
      %p91 = scmp.eq.s32.totalorder %s19, 0
      %p92 = por %p90, %p91
      %s94 = sadd.s32 %s93, 1
      %p97 = scmp.eq.s32.totalorder %s13, 1
      %p98 = scmp.ne.s32.totalorder %s93, %s95
      %p99 = scmp.eq.s32.totalorder %s13, 0
      %p100 = por %p98, %p99
      %p101 = scmp.ne.s32.totalorder %s93, %s95
      %p102 = scmp.eq.s32.totalorder %s18, 1
      %p103 = por %p101, %p102
      %p104 = scmp.ne.s32.totalorder %s95, %s96
      %p105 = scmp.eq.s32.totalorder %s18, 0
      %p106 = por %p104, %p105
      %p107 = scmp.ne.s32.totalorder %s95, %s96
      %p108 = scmp.eq.s32.totalorder %s19, 1
      %p109 = por %p107, %p108
      %p111 = scmp.ne.s32.totalorder %s96, %s110
      %p112 = scmp.eq.s32.totalorder %s19, 0
      %p113 = por %p111, %p112
      %s115 = sadd.s32 %s114, 1
      %p118 = scmp.eq.s32.totalorder %s13, 1
      %p119 = scmp.ne.s32.totalorder %s114, %s116
      %p120 = scmp.eq.s32.totalorder %s13, 0
      %p121 = por %p119, %p120
      %p122 = scmp.ne.s32.totalorder %s114, %s116
      %p123 = scmp.eq.s32.totalorder %s18, 1
      %p124 = por %p122, %p123
      %p125 = scmp.ne.s32.totalorder %s116, %s117
      %p126 = scmp.eq.s32.totalorder %s18, 0
      %p127 = por %p125, %p126
      %p128 = scmp.ne.s32.totalorder %s116, %s117
      %p129 = scmp.eq.s32.totalorder %s19, 1
      %p130 = por %p128, %p129
      %p132 = scmp.ne.s32.totalorder %s117, %s131
      %p133 = scmp.eq.s32.totalorder %s19, 0
      %p134 = por %p132, %p133
      %s135 = ssub.s32 %s20, %s32
      %s136 = ssub.s32 %s21, %s28
      %s137 = sor.u32 %s135, %s136
      %p138 = scmp.eq.s32.totalorder %s137, 0
      %s140 = sadd.s32 %s139, 1
      %s141 = scalar_select %p138, %s139, %s140
      %p144 = pneg %p138
      %p145 = scmp.eq.s32.totalorder %s13, 1
      %p146 = por %p144, %p145
      %p147 = scmp.ne.s32.totalorder %s139, %s142
      %p148 = scmp.eq.s32.totalorder %s13, 0
      %p149 = por %p147, %p148
      %p150 = scmp.ne.s32.totalorder %s139, %s142
      %p151 = scmp.eq.s32.totalorder %s18, 1
      %p152 = por %p150, %p151
      %p153 = scmp.ne.s32.totalorder %s142, %s143
      %p154 = scmp.eq.s32.totalorder %s18, 0
      %p155 = por %p153, %p154
      %p156 = scmp.ne.s32.totalorder %s142, %s143
      %p157 = scmp.eq.s32.totalorder %s19, 1
      %p158 = por %p156, %p157
      %p160 = scmp.ne.s32.totalorder %s143, %s159
      %p161 = scmp.eq.s32.totalorder %s19, 0
      %p162 = por %p160, %p161
      %p163 = scmp.le.s32.totalorder 1, %s13
      %p164 = scmp.lt.s32.totalorder %s13, 3
      %p165 = pnand %p163, %p164
      %p166 = pneg %p165
      // Predicated region
      $region9: #{tpu_custom_call.1} parent=5 // pred_check
        _
      $region10: #{tpu_custom_call.1} parent=5 // pred_check_branch
        %168 = sbr.rel (%p165) target = $region12
      $region11: #{tpu_custom_call.1} parent=5 // pred_region
        %s169 = ssub.s32 %s13, 1
        // Predicated region
        $region13: #{tpu_custom_call.1} parent=11 // pred_check
          %p170 = pneg %p106
        $region14: #{tpu_custom_call.1} parent=11 // pred_check_branch
          %172 = sbr.rel (%p170) target = $region16
        $region15: #{tpu_custom_call.1} parent=11 // pred_region
          _
        $region16: #{tpu_custom_call.1} parent=11 // pred_fallthru
          _
        // Predicated region
        $region17: #{tpu_custom_call.1} parent=11 // pred_check
          %p173 = pneg %p127
        $region18: #{tpu_custom_call.1} parent=11 // pred_check_branch
          %175 = sbr.rel (%p173) target = $region20
        $region19: #{tpu_custom_call.1} parent=11 // pred_region
          _
        $region20: #{tpu_custom_call.1} parent=11 // pred_fallthru
          _
      $region12: #{tpu_custom_call.1} parent=5 // pred_fallthru
        _
      %p176 = scmp.lt.s32.totalorder %s13, 2
      // Predicated region
      $region21: #{tpu_custom_call.1} parent=5 // pred_check
        %p177 = pneg %p176
      $region22: #{tpu_custom_call.1} parent=5 // pred_check_branch
        %179 = sbr.rel (%p177) target = $region24
      $region23: #{tpu_custom_call.1} parent=5 // pred_region
        // Predicated region
        $region25: #{tpu_custom_call.1} parent=23 // pred_check
          %p180 = pneg %p47
        $region26: #{tpu_custom_call.1} parent=23 // pred_check_branch
          %182 = sbr.rel (%p180) target = $region28
        $region27: #{tpu_custom_call.1} parent=23 // pred_region
          %s183 = smul.u32 16, %s21
          %s184 = ssub.s32 17, %s183
          %p185 = scmp.lt.s32.totalorder %s184, 16
          %s186 = scalar_select %p185, %s184, 16
          %s187 = smul.u32 8, %s186
          %s188 = smul.u32 %s187, 3
          %p189 = scmp.lt.s32.totalorder %s20, 1
          %s190 = scalar_select %p189, %s20, 1
          %p191 = scmp.lt.s32.totalorder %s183, 16
          %s192 = scalar_select %p191, %s183, 16
          %s193 = smul.addr %s192, 3
          %s194 = smul.addr %s190, 51
          %s195 = sadd.s32 %s193, %s194
          %s196 = smul.addr %s195, 8
          %s197 = scalar_lea.vmem %s0, %s196
          %s198 = smul.u32 16, %s21
          %s199 = ssub.s32 17, %s198
          %p200 = scmp.lt.s32.totalorder %s199, 16
          %s201 = scalar_select %p200, %s199, 16
          %s202 = smul.u32 8, %s201
          %s203 = smul.u32 %s202, 3
        $region28: #{tpu_custom_call.1} parent=23 // pred_fallthru
          _
        // Predicated region
        $region29: #{tpu_custom_call.1} parent=23 // pred_check
          %p204 = pneg %p79
        $region30: #{tpu_custom_call.1} parent=23 // pred_check_branch
          %206 = sbr.rel (%p204) target = $region32
        $region31: #{tpu_custom_call.1} parent=23 // pred_region
          %s207 = sadd.s32 %s21, 1
          %s208 = smul.u32 %s207, 16
          %p209 = scmp.lt.s32.totalorder %s20, 1
          %s210 = scalar_select %p209, %s20, 1
          %p211 = scmp.lt.s32.totalorder %s208, 16
          %s212 = scalar_select %p211, %s208, 16
          %s213 = smul.addr %s212, 3
          %s214 = smul.addr %s210, 51
          %s215 = sadd.s32 %s213, %s214
          %s216 = smul.addr %s215, 8
          %s217 = scalar_lea.vmem %s1, %s216
          %s218 = sadd.s32 %s21, 1
          %s219 = smul.u32 %s218, 16
        $region32: #{tpu_custom_call.1} parent=23 // pred_fallthru
          _
      $region24: #{tpu_custom_call.1} parent=5 // pred_fallthru
        _
      %p220 = scmp.le.s32.totalorder 1, %s13
      %p221 = scmp.lt.s32.totalorder %s13, 3
      %p222 = pnand %p220, %p221
      %p223 = pneg %p222
      // Predicated region
      $region33: #{tpu_custom_call.1} parent=5 // pred_check
        _
      $region34: #{tpu_custom_call.1} parent=5 // pred_check_branch
        %225 = sbr.rel (%p222) target = $region36
      $region35: #{tpu_custom_call.1} parent=5 // pred_region
        %s226 = ssub.s32 %s13, 1
        %s227 = smul.u32 16, %s23
        %s228 = ssub.s32 17, %s227
        %p229 = scmp.lt.s32.totalorder %s228, 16
        %s230 = scalar_select %p229, %s228, 16
        %s231 = smul.u32 8, %s230
        %s232 = smul.u32 %s231, 3
        %p233 = scmp.lt.s32.totalorder %s22, 1
        %s234 = scalar_select %p233, %s22, 1
        %p235 = scmp.lt.s32.totalorder %s227, 16
        %s236 = scalar_select %p235, %s227, 16
        %s237 = smul.addr %s236, 3
        %s238 = smul.addr %s234, 51
        %s239 = sadd.s32 %s237, %s238
        %s240 = smul.addr %s239, 8
        %s241 = scalar_lea.vmem %s0, %s240
        %p242 = pneg %p53
        %p243 = pneg %p50
        %s244 = sadd.s32 %s23, 1
        %s245 = smul.u32 %s244, 16
        %p246 = scmp.lt.s32.totalorder %s22, 1
        %s247 = scalar_select %p246, %s22, 1
        %p248 = scmp.lt.s32.totalorder %s245, 16
        %s249 = scalar_select %p248, %s245, 16
        %s250 = smul.addr %s249, 3
        %s251 = smul.addr %s247, 51
        %s252 = sadd.s32 %s250, %s251
        %s253 = smul.addr %s252, 8
        %s254 = scalar_lea.vmem %s1, %s253
        %p255 = pneg %p85
        %p256 = pneg %p82
        %p257 = pneg %p106
        %p258 = pneg %p103
        %p259 = pneg %p127
        %p260 = pneg %p124
        %p261 = pneg %p155
        %p262 = pneg %p152
        %s263 = sand.u32 %s142, 1
        %s264 = scalar_lea.sflag [#allocation3], %s263
        %s265 = sand.u32 %s142, 1
        %s266 = smul.addr %s265, 256
        %s267 = scalar_lea.vmem [#allocation2], %s266
        %s268 = smul.u32 16, %s23
        %s269 = ssub.s32 17, %s268
        %p270 = scmp.lt.s32.totalorder %s269, 16
        %s271 = scalar_select %p270, %s269, 16
        %s272 = smul.u32 8, %s271
        %s273 = smul.u32 %s272, 3
        %p274 = scmp.lt.s32.totalorder %s22, 1
        %s275 = scalar_select %p274, %s22, 1
        %p276 = scmp.lt.s32.totalorder %s268, 16
        %s277 = scalar_select %p276, %s268, 16
        %s278 = smul.addr %s277, 3
        %s279 = smul.addr %s275, 51
        %s280 = sadd.s32 %s278, %s279
        %s281 = smul.addr %s280, 8
        %s282 = scalar_lea.vmem %s0, %s281
        %s283 = smul.u32 16, %s23
        %s284 = ssub.s32 17, %s283
        %p285 = scmp.lt.s32.totalorder %s284, 16
        %s286 = scalar_select %p285, %s284, 16
        %s287 = smul.u32 8, %s286
        %s288 = smul.u32 %s287, 3
        %s289 = sadd.s32 %s23, 1
        %s290 = smul.u32 %s289, 16
        %p291 = scmp.lt.s32.totalorder %s22, 1
        %s292 = scalar_select %p291, %s22, 1
        %p293 = scmp.lt.s32.totalorder %s290, 16
        %s294 = scalar_select %p293, %s290, 16
        %s295 = smul.addr %s294, 3
        %s296 = smul.addr %s292, 51
        %s297 = sadd.s32 %s295, %s296
        %s298 = smul.addr %s297, 8
        %s299 = scalar_lea.vmem %s1, %s298
        %s300 = sadd.s32 %s23, 1
        %s301 = smul.u32 %s300, 16
        %s302 = smul.u32 16, %s23
        %v303 = vld [vmem:[%s282] sm:$0xff]
        %v304 = vld [vmem:[%s282 + $0x8] sm:$0xff]
        %v305 = vld [vmem:[%s282 + $0x10] sm:$0x3]
        %v306 = vld [vmem:[%s282 + $0x18] sm:$0xff]
        %v307 = vld [vmem:[%s282 + $0x20] sm:$0xff]
        %v308 = vld [vmem:[%s282 + $0x28] sm:$0x3]
        %v309 = vld [vmem:[%s282 + $0x30] sm:$0xff]
        %v310 = vld [vmem:[%s282 + $0x38] sm:$0xff]
        %v311 = vld [vmem:[%s282 + $0x40] sm:$0x3]
        %v312 = vld [vmem:[%s282 + $0x48] sm:$0xff]
        %v313 = vld [vmem:[%s282 + $0x50] sm:$0xff]
        %v314 = vld [vmem:[%s282 + $0x58] sm:$0x3]
        %v315 = vld [vmem:[%s282 + $0x60] sm:$0xff]
        %v316 = vld [vmem:[%s282 + $0x68] sm:$0xff]
        %v317 = vld [vmem:[%s282 + $0x70] sm:$0x3]
        %v318 = vld [vmem:[%s282 + $0x78] sm:$0xff]
        %v319 = vld [vmem:[%s282 + $0x80] sm:$0xff]
        %v320 = vld [vmem:[%s282 + $0x88] sm:$0x3]
        %v321 = vld [vmem:[%s282 + $0x90] sm:$0xff]
        %v322 = vld [vmem:[%s282 + $0x98] sm:$0xff]
        %v323 = vld [vmem:[%s282 + $0xa0] sm:$0x3]
        %v324 = vld [vmem:[%s282 + $0xa8] sm:$0xff]
        %v325 = vld [vmem:[%s282 + $0xb0] sm:$0xff]
        %v326 = vld [vmem:[%s282 + $0xb8] sm:$0x3]
        %v327 = vld [vmem:[%s282 + $0xc0] sm:$0xff]
        %v328 = vld [vmem:[%s282 + $0xc8] sm:$0xff]
        %v329 = vld [vmem:[%s282 + $0xd0] sm:$0x3]
        %v330 = vld [vmem:[%s282 + $0xd8] sm:$0xff]
        %v331 = vld [vmem:[%s282 + $0xe0] sm:$0xff]
        %v332 = vld [vmem:[%s282 + $0xe8] sm:$0x3]
        %v333 = vld [vmem:[%s282 + $0xf0] sm:$0xff]
        %v334 = vld [vmem:[%s282 + $0xf8] sm:$0xff]
        %v335 = vld [vmem:[%s282 + $0x100] sm:$0x3]
        %v336 = vld [vmem:[%s282 + $0x108] sm:$0xff]
        %v337 = vld [vmem:[%s282 + $0x110] sm:$0xff]
        %v338 = vld [vmem:[%s282 + $0x118] sm:$0x3]
        %v339 = vld [vmem:[%s282 + $0x120] sm:$0xff]
        %v340 = vld [vmem:[%s282 + $0x128] sm:$0xff]
        %v341 = vld [vmem:[%s282 + $0x130] sm:$0x3]
        %v342 = vld [vmem:[%s282 + $0x138] sm:$0xff]
        %v343 = vld [vmem:[%s282 + $0x140] sm:$0xff]
        %v344 = vld [vmem:[%s282 + $0x148] sm:$0x3]
        %v345 = vld [vmem:[%s282 + $0x150] sm:$0xff]
        %v346 = vld [vmem:[%s282 + $0x158] sm:$0xff]
        %v347 = vld [vmem:[%s282 + $0x160] sm:$0x3]
        %v348 = vld [vmem:[%s282 + $0x168] sm:$0xff]
        %v349 = vld [vmem:[%s282 + $0x170] sm:$0xff]
        %v350 = vld [vmem:[%s282 + $0x178] sm:$0x3]
        %v351 = vld [vmem:[%s299] sm:$0xff]
        %v352 = vld [vmem:[%s299 + $0x8] sm:$0xff]
        %v353 = vld [vmem:[%s299 + $0x10] sm:$0x3]
        %vm402 = vcmask 1046528
        %v403 = vrot.slane %v303, 1
        %v404 = vrot.slane %v304, 1
        %v405 = vsel %vm402, %v403, %v404
        %v406 = vrot.slane %v305, 1
        %v407 = vsel %vm402, %v404, %v406
        %v408 = vrot.slane %v306, 1
        %v409 = vrot.slane %v307, 1
        %v410 = vsel %vm402, %v408, %v409
        %v411 = vrot.slane %v308, 1
        %v412 = vsel %vm402, %v409, %v411
        %v413 = vrot.slane %v309, 1
        %v414 = vrot.slane %v310, 1
        %v415 = vsel %vm402, %v413, %v414
        %v416 = vrot.slane %v311, 1
        %v417 = vsel %vm402, %v414, %v416
        %v418 = vrot.slane %v312, 1
        %v419 = vrot.slane %v313, 1
        %v420 = vsel %vm402, %v418, %v419
        %v421 = vrot.slane %v314, 1
        %v422 = vsel %vm402, %v419, %v421
        %v423 = vrot.slane %v315, 1
        %v424 = vrot.slane %v316, 1
        %v425 = vsel %vm402, %v423, %v424
        %v426 = vrot.slane %v317, 1
        %v427 = vsel %vm402, %v424, %v426
        %v428 = vrot.slane %v318, 1
        %v429 = vrot.slane %v319, 1
        %v430 = vsel %vm402, %v428, %v429
        %v431 = vrot.slane %v320, 1
        %v432 = vsel %vm402, %v429, %v431
        %v433 = vrot.slane %v321, 1
        %v434 = vrot.slane %v322, 1
        %v435 = vsel %vm402, %v433, %v434
        %v436 = vrot.slane %v323, 1
        %v437 = vsel %vm402, %v434, %v436
        %v438 = vrot.slane %v324, 1
        %v439 = vrot.slane %v325, 1
        %v440 = vsel %vm402, %v438, %v439
        %v441 = vrot.slane %v326, 1
        %v442 = vsel %vm402, %v439, %v441
        %v443 = vrot.slane %v327, 1
        %v444 = vrot.slane %v328, 1
        %v445 = vsel %vm402, %v443, %v444
        %v446 = vrot.slane %v329, 1
        %v447 = vsel %vm402, %v444, %v446
        %v448 = vrot.slane %v330, 1
        %v449 = vrot.slane %v331, 1
        %v450 = vsel %vm402, %v448, %v449
        %v451 = vrot.slane %v332, 1
        %v452 = vsel %vm402, %v449, %v451
        %v453 = vrot.slane %v333, 1
        %v454 = vrot.slane %v334, 1
        %v455 = vsel %vm402, %v453, %v454
        %v456 = vrot.slane %v335, 1
        %v457 = vsel %vm402, %v454, %v456
        %v458 = vrot.slane %v336, 1
        %v459 = vrot.slane %v337, 1
        %v460 = vsel %vm402, %v458, %v459
        %v461 = vrot.slane %v338, 1
        %v462 = vsel %vm402, %v459, %v461
        %v463 = vrot.slane %v339, 1
        %v464 = vrot.slane %v340, 1
        %v465 = vsel %vm402, %v463, %v464
        %v466 = vrot.slane %v341, 1
        %v467 = vsel %vm402, %v464, %v466
        %v468 = vrot.slane %v342, 1
        %v469 = vrot.slane %v343, 1
        %v470 = vsel %vm402, %v468, %v469
        %v471 = vrot.slane %v344, 1
        %v472 = vsel %vm402, %v469, %v471
        %v473 = vrot.slane %v345, 1
        %v474 = vrot.slane %v346, 1
        %v475 = vsel %vm402, %v473, %v474
        %v476 = vrot.slane %v347, 1
        %v477 = vsel %vm402, %v474, %v476
        %v478 = vrot.slane %v348, 1
        %v479 = vrot.slane %v349, 1
        %v480 = vsel %vm402, %v478, %v479
        %v481 = vrot.slane %v350, 1
        %v482 = vsel %vm402, %v479, %v481
        %vm483 = vcmask 1045504
        %v484 = vrot.slane %v303, 2
        %v485 = vrot.slane %v304, 2
        %v486 = vsel %vm483, %v484, %v485
        %v487 = vrot.slane %v305, 2
        %v488 = vsel %vm483, %v485, %v487
        %v489 = vrot.slane %v306, 2
        %v490 = vrot.slane %v307, 2
        %v491 = vsel %vm483, %v489, %v490
        %v492 = vrot.slane %v308, 2
        %v493 = vsel %vm483, %v490, %v492
        %v494 = vrot.slane %v309, 2
        %v495 = vrot.slane %v310, 2
        %v496 = vsel %vm483, %v494, %v495
        %v497 = vrot.slane %v311, 2
        %v498 = vsel %vm483, %v495, %v497
        %v499 = vrot.slane %v312, 2
        %v500 = vrot.slane %v313, 2
        %v501 = vsel %vm483, %v499, %v500
        %v502 = vrot.slane %v314, 2
        %v503 = vsel %vm483, %v500, %v502
        %v504 = vrot.slane %v315, 2
        %v505 = vrot.slane %v316, 2
        %v506 = vsel %vm483, %v504, %v505
        %v507 = vrot.slane %v317, 2
        %v508 = vsel %vm483, %v505, %v507
        %v509 = vrot.slane %v318, 2
        %v510 = vrot.slane %v319, 2
        %v511 = vsel %vm483, %v509, %v510
        %v512 = vrot.slane %v320, 2
        %v513 = vsel %vm483, %v510, %v512
        %v514 = vrot.slane %v321, 2
        %v515 = vrot.slane %v322, 2
        %v516 = vsel %vm483, %v514, %v515
        %v517 = vrot.slane %v323, 2
        %v518 = vsel %vm483, %v515, %v517
        %v519 = vrot.slane %v324, 2
        %v520 = vrot.slane %v325, 2
        %v521 = vsel %vm483, %v519, %v520
        %v522 = vrot.slane %v326, 2
        %v523 = vsel %vm483, %v520, %v522
        %v524 = vrot.slane %v327, 2
        %v525 = vrot.slane %v328, 2
        %v526 = vsel %vm483, %v524, %v525
        %v527 = vrot.slane %v329, 2
        %v528 = vsel %vm483, %v525, %v527
        %v529 = vrot.slane %v330, 2
        %v530 = vrot.slane %v331, 2
        %v531 = vsel %vm483, %v529, %v530
        %v532 = vrot.slane %v332, 2
        %v533 = vsel %vm483, %v530, %v532
        %v534 = vrot.slane %v333, 2
        %v535 = vrot.slane %v334, 2
        %v536 = vsel %vm483, %v534, %v535
        %v537 = vrot.slane %v335, 2
        %v538 = vsel %vm483, %v535, %v537
        %v539 = vrot.slane %v336, 2
        %v540 = vrot.slane %v337, 2
        %v541 = vsel %vm483, %v539, %v540
        %v542 = vrot.slane %v338, 2
        %v543 = vsel %vm483, %v540, %v542
        %v544 = vrot.slane %v339, 2
        %v545 = vrot.slane %v340, 2
        %v546 = vsel %vm483, %v544, %v545
        %v547 = vrot.slane %v341, 2
        %v548 = vsel %vm483, %v545, %v547
        %v549 = vrot.slane %v342, 2
        %v550 = vrot.slane %v343, 2
        %v551 = vsel %vm483, %v549, %v550
        %v552 = vrot.slane %v344, 2
        %v553 = vsel %vm483, %v550, %v552
        %v554 = vrot.slane %v345, 2
        %v555 = vrot.slane %v346, 2
        %v556 = vsel %vm483, %v554, %v555
        %v557 = vrot.slane %v347, 2
        %v558 = vsel %vm483, %v555, %v557
        %v559 = vrot.slane %v348, 2
        %v560 = vrot.slane %v349, 2
        %v561 = vsel %vm483, %v559, %v560
        %v562 = vrot.slane %v350, 2
        %v563 = vsel %vm483, %v560, %v562
        %v567 = vrot.slane %v351, 1
        %v568 = vrot.slane %v352, 1
        %v569 = vsel %vm402, %v567, %v568
        %v570 = vrot.slane %v353, 1
        %v571 = vsel %vm402, %v568, %v570
        %v572 = vrot.slane %v351, 2
        %v573 = vrot.slane %v352, 2
        %v574 = vsel %vm483, %v572, %v573
        %v575 = vrot.slane %v353, 2
        %v576 = vsel %vm483, %v573, %v575
        %577 = vrot.lane.b32.xlu0 %v405, 4
        %v578 = vpop.permute.xlu0 %577
        %579 = vrot.lane.b32.xlu0 %v407, 4
        %v580 = vpop.permute.xlu0 %579
        %581 = vrot.lane.b32.xlu0 %v410, 4
        %v582 = vpop.permute.xlu0 %581
        %583 = vrot.lane.b32.xlu0 %v412, 4
        %v584 = vpop.permute.xlu0 %583
        %585 = vrot.lane.b32.xlu0 %v415, 4
        %v586 = vpop.permute.xlu0 %585
        %587 = vrot.lane.b32.xlu0 %v417, 4
        %v588 = vpop.permute.xlu0 %587
        %589 = vrot.lane.b32.xlu0 %v420, 4
        %v590 = vpop.permute.xlu0 %589
        %591 = vrot.lane.b32.xlu0 %v422, 4
        %v592 = vpop.permute.xlu0 %591
        %593 = vrot.lane.b32.xlu0 %v425, 4
        %v594 = vpop.permute.xlu0 %593
        %595 = vrot.lane.b32.xlu0 %v427, 4
        %v596 = vpop.permute.xlu0 %595
        %597 = vrot.lane.b32.xlu0 %v430, 4
        %v598 = vpop.permute.xlu0 %597
        %599 = vrot.lane.b32.xlu0 %v432, 4
        %v600 = vpop.permute.xlu0 %599
        %601 = vrot.lane.b32.xlu0 %v435, 4
        %v602 = vpop.permute.xlu0 %601
        %603 = vrot.lane.b32.xlu0 %v437, 4
        %v604 = vpop.permute.xlu0 %603
        %605 = vrot.lane.b32.xlu0 %v440, 4
        %v606 = vpop.permute.xlu0 %605
        %607 = vrot.lane.b32.xlu0 %v442, 4
        %v608 = vpop.permute.xlu0 %607
        %609 = vrot.lane.b32.xlu0 %v445, 4
        %v610 = vpop.permute.xlu0 %609
        %611 = vrot.lane.b32.xlu0 %v447, 4
        %v612 = vpop.permute.xlu0 %611
        %613 = vrot.lane.b32.xlu0 %v450, 4
        %v614 = vpop.permute.xlu0 %613
        %615 = vrot.lane.b32.xlu0 %v452, 4
        %v616 = vpop.permute.xlu0 %615
        %617 = vrot.lane.b32.xlu0 %v455, 4
        %v618 = vpop.permute.xlu0 %617
        %619 = vrot.lane.b32.xlu0 %v457, 4
        %v620 = vpop.permute.xlu0 %619
        %621 = vrot.lane.b32.xlu0 %v460, 4
        %v622 = vpop.permute.xlu0 %621
        %623 = vrot.lane.b32.xlu0 %v462, 4
        %v624 = vpop.permute.xlu0 %623
        %625 = vrot.lane.b32.xlu0 %v465, 4
        %v626 = vpop.permute.xlu0 %625
        %627 = vrot.lane.b32.xlu0 %v467, 4
        %v628 = vpop.permute.xlu0 %627
        %629 = vrot.lane.b32.xlu0 %v470, 4
        %v630 = vpop.permute.xlu0 %629
        %631 = vrot.lane.b32.xlu0 %v472, 4
        %v632 = vpop.permute.xlu0 %631
        %633 = vrot.lane.b32.xlu0 %v475, 4
        %v634 = vpop.permute.xlu0 %633
        %635 = vrot.lane.b32.xlu0 %v477, 4
        %v636 = vpop.permute.xlu0 %635
        %637 = vrot.lane.b32.xlu0 %v480, 4
        %v638 = vpop.permute.xlu0 %637
        %639 = vrot.lane.b32.xlu0 %v482, 4
        %v640 = vpop.permute.xlu0 %639
        %673 = vrot.lane.b32.xlu0 %v486, 8
        %v674 = vpop.permute.xlu0 %673
        %675 = vrot.lane.b32.xlu0 %v488, 8
        %v676 = vpop.permute.xlu0 %675
        %677 = vrot.lane.b32.xlu0 %v491, 8
        %v678 = vpop.permute.xlu0 %677
        %679 = vrot.lane.b32.xlu0 %v493, 8
        %v680 = vpop.permute.xlu0 %679
        %681 = vrot.lane.b32.xlu0 %v496, 8
        %v682 = vpop.permute.xlu0 %681
        %683 = vrot.lane.b32.xlu0 %v498, 8
        %v684 = vpop.permute.xlu0 %683
        %685 = vrot.lane.b32.xlu0 %v501, 8
        %v686 = vpop.permute.xlu0 %685
        %687 = vrot.lane.b32.xlu0 %v503, 8
        %v688 = vpop.permute.xlu0 %687
        %689 = vrot.lane.b32.xlu0 %v506, 8
        %v690 = vpop.permute.xlu0 %689
        %691 = vrot.lane.b32.xlu0 %v508, 8
        %v692 = vpop.permute.xlu0 %691
        %693 = vrot.lane.b32.xlu0 %v511, 8
        %v694 = vpop.permute.xlu0 %693
        %695 = vrot.lane.b32.xlu0 %v513, 8
        %v696 = vpop.permute.xlu0 %695
        %697 = vrot.lane.b32.xlu0 %v516, 8
        %v698 = vpop.permute.xlu0 %697
        %699 = vrot.lane.b32.xlu0 %v518, 8
        %v700 = vpop.permute.xlu0 %699
        %701 = vrot.lane.b32.xlu0 %v521, 8
        %v702 = vpop.permute.xlu0 %701
        %703 = vrot.lane.b32.xlu0 %v523, 8
        %v704 = vpop.permute.xlu0 %703
        %705 = vrot.lane.b32.xlu0 %v526, 8
        %v706 = vpop.permute.xlu0 %705
        %707 = vrot.lane.b32.xlu0 %v528, 8
        %v708 = vpop.permute.xlu0 %707
        %709 = vrot.lane.b32.xlu0 %v531, 8
        %v710 = vpop.permute.xlu0 %709
        %711 = vrot.lane.b32.xlu0 %v533, 8
        %v712 = vpop.permute.xlu0 %711
        %713 = vrot.lane.b32.xlu0 %v536, 8
        %v714 = vpop.permute.xlu0 %713
        %715 = vrot.lane.b32.xlu0 %v538, 8
        %v716 = vpop.permute.xlu0 %715
        %717 = vrot.lane.b32.xlu0 %v541, 8
        %v718 = vpop.permute.xlu0 %717
        %719 = vrot.lane.b32.xlu0 %v543, 8
        %v720 = vpop.permute.xlu0 %719
        %721 = vrot.lane.b32.xlu0 %v546, 8
        %v722 = vpop.permute.xlu0 %721
        %723 = vrot.lane.b32.xlu0 %v548, 8
        %v724 = vpop.permute.xlu0 %723
        %725 = vrot.lane.b32.xlu0 %v551, 8
        %v726 = vpop.permute.xlu0 %725
        %727 = vrot.lane.b32.xlu0 %v553, 8
        %v728 = vpop.permute.xlu0 %727
        %729 = vrot.lane.b32.xlu0 %v556, 8
        %v730 = vpop.permute.xlu0 %729
        %731 = vrot.lane.b32.xlu0 %v558, 8
        %v732 = vpop.permute.xlu0 %731
        %733 = vrot.lane.b32.xlu0 %v561, 8
        %v734 = vpop.permute.xlu0 %733
        %735 = vrot.lane.b32.xlu0 %v563, 8
        %v736 = vpop.permute.xlu0 %735
        %769 = vrot.lane.b32.xlu0 %v306, 12
        %v770 = vpop.permute.xlu0 %769
        %771 = vrot.lane.b32.xlu0 %v307, 12
        %v772 = vpop.permute.xlu0 %771
        %773 = vrot.lane.b32.xlu0 %v309, 12
        %v774 = vpop.permute.xlu0 %773
        %775 = vrot.lane.b32.xlu0 %v310, 12
        %v776 = vpop.permute.xlu0 %775
        %777 = vrot.lane.b32.xlu0 %v312, 12
        %v778 = vpop.permute.xlu0 %777
        %779 = vrot.lane.b32.xlu0 %v313, 12
        %v780 = vpop.permute.xlu0 %779
        %781 = vrot.lane.b32.xlu0 %v315, 12
        %v782 = vpop.permute.xlu0 %781
        %783 = vrot.lane.b32.xlu0 %v316, 12
        %v784 = vpop.permute.xlu0 %783
        %785 = vrot.lane.b32.xlu0 %v318, 12
        %v786 = vpop.permute.xlu0 %785
        %787 = vrot.lane.b32.xlu0 %v319, 12
        %v788 = vpop.permute.xlu0 %787
        %789 = vrot.lane.b32.xlu0 %v321, 12
        %v790 = vpop.permute.xlu0 %789
        %791 = vrot.lane.b32.xlu0 %v322, 12
        %v792 = vpop.permute.xlu0 %791
        %793 = vrot.lane.b32.xlu0 %v324, 12
        %v794 = vpop.permute.xlu0 %793
        %795 = vrot.lane.b32.xlu0 %v325, 12
        %v796 = vpop.permute.xlu0 %795
        %797 = vrot.lane.b32.xlu0 %v327, 12
        %v798 = vpop.permute.xlu0 %797
        %799 = vrot.lane.b32.xlu0 %v328, 12
        %v800 = vpop.permute.xlu0 %799
        %801 = vrot.lane.b32.xlu0 %v330, 12
        %v802 = vpop.permute.xlu0 %801
        %803 = vrot.lane.b32.xlu0 %v331, 12
        %v804 = vpop.permute.xlu0 %803
        %805 = vrot.lane.b32.xlu0 %v333, 12
        %v806 = vpop.permute.xlu0 %805
        %807 = vrot.lane.b32.xlu0 %v334, 12
        %v808 = vpop.permute.xlu0 %807
        %809 = vrot.lane.b32.xlu0 %v336, 12
        %v810 = vpop.permute.xlu0 %809
        %811 = vrot.lane.b32.xlu0 %v337, 12
        %v812 = vpop.permute.xlu0 %811
        %813 = vrot.lane.b32.xlu0 %v339, 12
        %v814 = vpop.permute.xlu0 %813
        %815 = vrot.lane.b32.xlu0 %v340, 12
        %v816 = vpop.permute.xlu0 %815
        %817 = vrot.lane.b32.xlu0 %v342, 12
        %v818 = vpop.permute.xlu0 %817
        %819 = vrot.lane.b32.xlu0 %v343, 12
        %v820 = vpop.permute.xlu0 %819
        %821 = vrot.lane.b32.xlu0 %v345, 12
        %v822 = vpop.permute.xlu0 %821
        %823 = vrot.lane.b32.xlu0 %v346, 12
        %v824 = vpop.permute.xlu0 %823
        %825 = vrot.lane.b32.xlu0 %v348, 12
        %v826 = vpop.permute.xlu0 %825
        %827 = vrot.lane.b32.xlu0 %v349, 12
        %v828 = vpop.permute.xlu0 %827
        %829 = vrot.lane.b32.xlu0 %v351, 12
        %v830 = vpop.permute.xlu0 %829
        %831 = vrot.lane.b32.xlu0 %v352, 12
        %v832 = vpop.permute.xlu0 %831
        %865 = vrot.lane.b32.xlu0 %v410, 16
        %v866 = vpop.permute.xlu0 %865
        %867 = vrot.lane.b32.xlu0 %v412, 16
        %v868 = vpop.permute.xlu0 %867
        %869 = vrot.lane.b32.xlu0 %v415, 16
        %v870 = vpop.permute.xlu0 %869
        %871 = vrot.lane.b32.xlu0 %v417, 16
        %v872 = vpop.permute.xlu0 %871
        %873 = vrot.lane.b32.xlu0 %v420, 16
        %v874 = vpop.permute.xlu0 %873
        %875 = vrot.lane.b32.xlu0 %v422, 16
        %v876 = vpop.permute.xlu0 %875
        %877 = vrot.lane.b32.xlu0 %v425, 16
        %v878 = vpop.permute.xlu0 %877
        %879 = vrot.lane.b32.xlu0 %v427, 16
        %v880 = vpop.permute.xlu0 %879
        %881 = vrot.lane.b32.xlu0 %v430, 16
        %v882 = vpop.permute.xlu0 %881
        %883 = vrot.lane.b32.xlu0 %v432, 16
        %v884 = vpop.permute.xlu0 %883
        %885 = vrot.lane.b32.xlu0 %v435, 16
        %v886 = vpop.permute.xlu0 %885
        %887 = vrot.lane.b32.xlu0 %v437, 16
        %v888 = vpop.permute.xlu0 %887
        %889 = vrot.lane.b32.xlu0 %v440, 16
        %v890 = vpop.permute.xlu0 %889
        %891 = vrot.lane.b32.xlu0 %v442, 16
        %v892 = vpop.permute.xlu0 %891
        %893 = vrot.lane.b32.xlu0 %v445, 16
        %v894 = vpop.permute.xlu0 %893
        %895 = vrot.lane.b32.xlu0 %v447, 16
        %v896 = vpop.permute.xlu0 %895
        %897 = vrot.lane.b32.xlu0 %v450, 16
        %v898 = vpop.permute.xlu0 %897
        %899 = vrot.lane.b32.xlu0 %v452, 16
        %v900 = vpop.permute.xlu0 %899
        %901 = vrot.lane.b32.xlu0 %v455, 16
        %v902 = vpop.permute.xlu0 %901
        %903 = vrot.lane.b32.xlu0 %v457, 16
        %v904 = vpop.permute.xlu0 %903
        %905 = vrot.lane.b32.xlu0 %v460, 16
        %v906 = vpop.permute.xlu0 %905
        %907 = vrot.lane.b32.xlu0 %v462, 16
        %v908 = vpop.permute.xlu0 %907
        %909 = vrot.lane.b32.xlu0 %v465, 16
        %v910 = vpop.permute.xlu0 %909
        %911 = vrot.lane.b32.xlu0 %v467, 16
        %v912 = vpop.permute.xlu0 %911
        %913 = vrot.lane.b32.xlu0 %v470, 16
        %v914 = vpop.permute.xlu0 %913
        %915 = vrot.lane.b32.xlu0 %v472, 16
        %v916 = vpop.permute.xlu0 %915
        %917 = vrot.lane.b32.xlu0 %v475, 16
        %v918 = vpop.permute.xlu0 %917
        %919 = vrot.lane.b32.xlu0 %v477, 16
        %v920 = vpop.permute.xlu0 %919
        %921 = vrot.lane.b32.xlu0 %v480, 16
        %v922 = vpop.permute.xlu0 %921
        %923 = vrot.lane.b32.xlu0 %v482, 16
        %v924 = vpop.permute.xlu0 %923
        %925 = vrot.lane.b32.xlu0 %v569, 16
        %v926 = vpop.permute.xlu0 %925
        %927 = vrot.lane.b32.xlu0 %v571, 16
        %v928 = vpop.permute.xlu0 %927
        %961 = vrot.lane.b32.xlu0 %v491, 20
        %v962 = vpop.permute.xlu0 %961
        %963 = vrot.lane.b32.xlu0 %v493, 20
        %v964 = vpop.permute.xlu0 %963
        %965 = vrot.lane.b32.xlu0 %v496, 20
        %v966 = vpop.permute.xlu0 %965
        %967 = vrot.lane.b32.xlu0 %v498, 20
        %v968 = vpop.permute.xlu0 %967
        %969 = vrot.lane.b32.xlu0 %v501, 20
        %v970 = vpop.permute.xlu0 %969
        %971 = vrot.lane.b32.xlu0 %v503, 20
        %v972 = vpop.permute.xlu0 %971
        %973 = vrot.lane.b32.xlu0 %v506, 20
        %v974 = vpop.permute.xlu0 %973
        %975 = vrot.lane.b32.xlu0 %v508, 20
        %v976 = vpop.permute.xlu0 %975
        %977 = vrot.lane.b32.xlu0 %v511, 20
        %v978 = vpop.permute.xlu0 %977
        %979 = vrot.lane.b32.xlu0 %v513, 20
        %v980 = vpop.permute.xlu0 %979
        %981 = vrot.lane.b32.xlu0 %v516, 20
        %v982 = vpop.permute.xlu0 %981
        %983 = vrot.lane.b32.xlu0 %v518, 20
        %v984 = vpop.permute.xlu0 %983
        %985 = vrot.lane.b32.xlu0 %v521, 20
        %v986 = vpop.permute.xlu0 %985
        %987 = vrot.lane.b32.xlu0 %v523, 20
        %v988 = vpop.permute.xlu0 %987
        %989 = vrot.lane.b32.xlu0 %v526, 20
        %v990 = vpop.permute.xlu0 %989
        %991 = vrot.lane.b32.xlu0 %v528, 20
        %v992 = vpop.permute.xlu0 %991
        %993 = vrot.lane.b32.xlu0 %v531, 20
        %v994 = vpop.permute.xlu0 %993
        %995 = vrot.lane.b32.xlu0 %v533, 20
        %v996 = vpop.permute.xlu0 %995
        %997 = vrot.lane.b32.xlu0 %v536, 20
        %v998 = vpop.permute.xlu0 %997
        %999 = vrot.lane.b32.xlu0 %v538, 20
        %v1000 = vpop.permute.xlu0 %999
        %1001 = vrot.lane.b32.xlu0 %v541, 20
        %v1002 = vpop.permute.xlu0 %1001
        %1003 = vrot.lane.b32.xlu0 %v543, 20
        %v1004 = vpop.permute.xlu0 %1003
        %1005 = vrot.lane.b32.xlu0 %v546, 20
        %v1006 = vpop.permute.xlu0 %1005
        %1007 = vrot.lane.b32.xlu0 %v548, 20
        %v1008 = vpop.permute.xlu0 %1007
        %1009 = vrot.lane.b32.xlu0 %v551, 20
        %v1010 = vpop.permute.xlu0 %1009
        %1011 = vrot.lane.b32.xlu0 %v553, 20
        %v1012 = vpop.permute.xlu0 %1011
        %1013 = vrot.lane.b32.xlu0 %v556, 20
        %v1014 = vpop.permute.xlu0 %1013
        %1015 = vrot.lane.b32.xlu0 %v558, 20
        %v1016 = vpop.permute.xlu0 %1015
        %1017 = vrot.lane.b32.xlu0 %v561, 20
        %v1018 = vpop.permute.xlu0 %1017
        %1019 = vrot.lane.b32.xlu0 %v563, 20
        %v1020 = vpop.permute.xlu0 %1019
        %1021 = vrot.lane.b32.xlu0 %v574, 20
        %v1022 = vpop.permute.xlu0 %1021
        %1023 = vrot.lane.b32.xlu0 %v576, 20
        %v1024 = vpop.permute.xlu0 %1023
        %vm1057 = vcmask 31744
        %v1058 = vsel %vm1057, %v303, %v578
        %v1059 = vsel %vm1057, %v304, %v580
        %v1060 = vsel %vm1057, %v306, %v582
        %v1061 = vsel %vm1057, %v307, %v584
        %v1062 = vsel %vm1057, %v309, %v586
        %v1063 = vsel %vm1057, %v310, %v588
        %v1064 = vsel %vm1057, %v312, %v590
        %v1065 = vsel %vm1057, %v313, %v592
        %v1066 = vsel %vm1057, %v315, %v594
        %v1067 = vsel %vm1057, %v316, %v596
        %v1068 = vsel %vm1057, %v318, %v598
        %v1069 = vsel %vm1057, %v319, %v600
        %v1070 = vsel %vm1057, %v321, %v602
        %v1071 = vsel %vm1057, %v322, %v604
        %v1072 = vsel %vm1057, %v324, %v606
        %v1073 = vsel %vm1057, %v325, %v608
        %v1074 = vsel %vm1057, %v327, %v610
        %v1075 = vsel %vm1057, %v328, %v612
        %v1076 = vsel %vm1057, %v330, %v614
        %v1077 = vsel %vm1057, %v331, %v616
        %v1078 = vsel %vm1057, %v333, %v618
        %v1079 = vsel %vm1057, %v334, %v620
        %v1080 = vsel %vm1057, %v336, %v622
        %v1081 = vsel %vm1057, %v337, %v624
        %v1082 = vsel %vm1057, %v339, %v626
        %v1083 = vsel %vm1057, %v340, %v628
        %v1084 = vsel %vm1057, %v342, %v630
        %v1085 = vsel %vm1057, %v343, %v632
        %v1086 = vsel %vm1057, %v345, %v634
        %v1087 = vsel %vm1057, %v346, %v636
        %v1088 = vsel %vm1057, %v348, %v638
        %v1089 = vsel %vm1057, %v349, %v640
        %vm1090 = vcmask 64512
        %v1091 = vsel %vm1090, %v1058, %v674
        %v1092 = vsel %vm1090, %v1059, %v676
        %v1093 = vsel %vm1090, %v1060, %v678
        %v1094 = vsel %vm1090, %v1061, %v680
        %v1095 = vsel %vm1090, %v1062, %v682
        %v1096 = vsel %vm1090, %v1063, %v684
        %v1097 = vsel %vm1090, %v1064, %v686
        %v1098 = vsel %vm1090, %v1065, %v688
        %v1099 = vsel %vm1090, %v1066, %v690
        %v1100 = vsel %vm1090, %v1067, %v692
        %v1101 = vsel %vm1090, %v1068, %v694
        %v1102 = vsel %vm1090, %v1069, %v696
        %v1103 = vsel %vm1090, %v1070, %v698
        %v1104 = vsel %vm1090, %v1071, %v700
        %v1105 = vsel %vm1090, %v1072, %v702
        %v1106 = vsel %vm1090, %v1073, %v704
        %v1107 = vsel %vm1090, %v1074, %v706
        %v1108 = vsel %vm1090, %v1075, %v708
        %v1109 = vsel %vm1090, %v1076, %v710
        %v1110 = vsel %vm1090, %v1077, %v712
        %v1111 = vsel %vm1090, %v1078, %v714
        %v1112 = vsel %vm1090, %v1079, %v716
        %v1113 = vsel %vm1090, %v1080, %v718
        %v1114 = vsel %vm1090, %v1081, %v720
        %v1115 = vsel %vm1090, %v1082, %v722
        %v1116 = vsel %vm1090, %v1083, %v724
        %v1117 = vsel %vm1090, %v1084, %v726
        %v1118 = vsel %vm1090, %v1085, %v728
        %v1119 = vsel %vm1090, %v1086, %v730
        %v1120 = vsel %vm1090, %v1087, %v732
        %v1121 = vsel %vm1090, %v1088, %v734
        %v1122 = vsel %vm1090, %v1089, %v736
        %vm1123 = vcmask 97280
        %v1124 = vsel %vm1123, %v1091, %v770
        %v1125 = vsel %vm1123, %v1092, %v772
        %v1126 = vsel %vm1123, %v1093, %v774
        %v1127 = vsel %vm1123, %v1094, %v776
        %v1128 = vsel %vm1123, %v1095, %v778
        %v1129 = vsel %vm1123, %v1096, %v780
        %v1130 = vsel %vm1123, %v1097, %v782
        %v1131 = vsel %vm1123, %v1098, %v784
        %v1132 = vsel %vm1123, %v1099, %v786
        %v1133 = vsel %vm1123, %v1100, %v788
        %v1134 = vsel %vm1123, %v1101, %v790
        %v1135 = vsel %vm1123, %v1102, %v792
        %v1136 = vsel %vm1123, %v1103, %v794
        %v1137 = vsel %vm1123, %v1104, %v796
        %v1138 = vsel %vm1123, %v1105, %v798
        %v1139 = vsel %vm1123, %v1106, %v800
        %v1140 = vsel %vm1123, %v1107, %v802
        %v1141 = vsel %vm1123, %v1108, %v804
        %v1142 = vsel %vm1123, %v1109, %v806
        %v1143 = vsel %vm1123, %v1110, %v808
        %v1144 = vsel %vm1123, %v1111, %v810
        %v1145 = vsel %vm1123, %v1112, %v812
        %v1146 = vsel %vm1123, %v1113, %v814
        %v1147 = vsel %vm1123, %v1114, %v816
        %v1148 = vsel %vm1123, %v1115, %v818
        %v1149 = vsel %vm1123, %v1116, %v820
        %v1150 = vsel %vm1123, %v1117, %v822
        %v1151 = vsel %vm1123, %v1118, %v824
        %v1152 = vsel %vm1123, %v1119, %v826
        %v1153 = vsel %vm1123, %v1120, %v828
        %v1154 = vsel %vm1123, %v1121, %v830
        %v1155 = vsel %vm1123, %v1122, %v832
        %vm1156 = vcmask 130048
        %v1157 = vsel %vm1156, %v1124, %v866
        %v1158 = vsel %vm1156, %v1125, %v868
        %v1159 = vsel %vm1156, %v1126, %v870
        %v1160 = vsel %vm1156, %v1127, %v872
        %v1161 = vsel %vm1156, %v1128, %v874
        %v1162 = vsel %vm1156, %v1129, %v876
        %v1163 = vsel %vm1156, %v1130, %v878
        %v1164 = vsel %vm1156, %v1131, %v880
        %v1165 = vsel %vm1156, %v1132, %v882
        %v1166 = vsel %vm1156, %v1133, %v884
        %v1167 = vsel %vm1156, %v1134, %v886
        %v1168 = vsel %vm1156, %v1135, %v888
        %v1169 = vsel %vm1156, %v1136, %v890
        %v1170 = vsel %vm1156, %v1137, %v892
        %v1171 = vsel %vm1156, %v1138, %v894
        %v1172 = vsel %vm1156, %v1139, %v896
        %v1173 = vsel %vm1156, %v1140, %v898
        %v1174 = vsel %vm1156, %v1141, %v900
        %v1175 = vsel %vm1156, %v1142, %v902
        %v1176 = vsel %vm1156, %v1143, %v904
        %v1177 = vsel %vm1156, %v1144, %v906
        %v1178 = vsel %vm1156, %v1145, %v908
        %v1179 = vsel %vm1156, %v1146, %v910
        %v1180 = vsel %vm1156, %v1147, %v912
        %v1181 = vsel %vm1156, %v1148, %v914
        %v1182 = vsel %vm1156, %v1149, %v916
        %v1183 = vsel %vm1156, %v1150, %v918
        %v1184 = vsel %vm1156, %v1151, %v920
        %v1185 = vsel %vm1156, %v1152, %v922
        %v1186 = vsel %vm1156, %v1153, %v924
        %v1187 = vsel %vm1156, %v1154, %v926
        %v1188 = vsel %vm1156, %v1155, %v928
        %vm1189 = vcmask 162816
        %v1190 = vsel %vm1189, %v1157, %v962
        %v1191 = vsel %vm1189, %v1158, %v964
        %v1192 = vsel %vm1189, %v1159, %v966
        %v1193 = vsel %vm1189, %v1160, %v968
        %v1194 = vsel %vm1189, %v1161, %v970
        %v1195 = vsel %vm1189, %v1162, %v972
        %v1196 = vsel %vm1189, %v1163, %v974
        %v1197 = vsel %vm1189, %v1164, %v976
        %v1198 = vsel %vm1189, %v1165, %v978
        %v1199 = vsel %vm1189, %v1166, %v980
        %v1200 = vsel %vm1189, %v1167, %v982
        %v1201 = vsel %vm1189, %v1168, %v984
        %v1202 = vsel %vm1189, %v1169, %v986
        %v1203 = vsel %vm1189, %v1170, %v988
        %v1204 = vsel %vm1189, %v1171, %v990
        %v1205 = vsel %vm1189, %v1172, %v992
        %v1206 = vsel %vm1189, %v1173, %v994
        %v1207 = vsel %vm1189, %v1174, %v996
        %v1208 = vsel %vm1189, %v1175, %v998
        %v1209 = vsel %vm1189, %v1176, %v1000
        %v1210 = vsel %vm1189, %v1177, %v1002
        %v1211 = vsel %vm1189, %v1178, %v1004
        %v1212 = vsel %vm1189, %v1179, %v1006
        %v1213 = vsel %vm1189, %v1180, %v1008
        %v1214 = vsel %vm1189, %v1181, %v1010
        %v1215 = vsel %vm1189, %v1182, %v1012
        %v1216 = vsel %vm1189, %v1183, %v1014
        %v1217 = vsel %vm1189, %v1184, %v1016
        %v1218 = vsel %vm1189, %v1185, %v1018
        %v1219 = vsel %vm1189, %v1186, %v1020
        %v1220 = vsel %vm1189, %v1187, %v1022
        %v1221 = vsel %vm1189, %v1188, %v1024
        %v1222 = vld [vmem:[%s2] sm:$0xff]
        %v1223 = vld [vmem:[%s2 + $0x8] sm:$0xff]
        %v1224 = vld [vmem:[%s2 + $0x10] sm:$0xff]
        %v1225 = vld [vmem:[%s3] sm:$0x1]
        %v1227 = vperm.slane %v1225, 0
        %vm1229 = vcmask 195584
        %v1231 = vsel %vm1229, %v1190, 0
        %v1234 = vsel %vm1229, %v1191, 0
        %v1237 = vsel %vm1229, %v1192, 0
        %v1240 = vsel %vm1229, %v1193, 0
        %v1243 = vsel %vm1229, %v1194, 0
        %v1246 = vsel %vm1229, %v1195, 0
        %v1249 = vsel %vm1229, %v1196, 0
        %v1252 = vsel %vm1229, %v1197, 0
        %v1255 = vsel %vm1229, %v1198, 0
        %v1258 = vsel %vm1229, %v1199, 0
        %v1261 = vsel %vm1229, %v1200, 0
        %v1264 = vsel %vm1229, %v1201, 0
        %v1267 = vsel %vm1229, %v1202, 0
        %v1270 = vsel %vm1229, %v1203, 0
        %v1273 = vsel %vm1229, %v1204, 0
        %v1276 = vsel %vm1229, %v1205, 0
        %v1279 = vsel %vm1229, %v1206, 0
        %v1282 = vsel %vm1229, %v1207, 0
        %v1285 = vsel %vm1229, %v1208, 0
        %v1288 = vsel %vm1229, %v1209, 0
        %v1291 = vsel %vm1229, %v1210, 0
        %v1294 = vsel %vm1229, %v1211, 0
        %v1297 = vsel %vm1229, %v1212, 0
        %v1300 = vsel %vm1229, %v1213, 0
        %v1303 = vsel %vm1229, %v1214, 0
        %v1306 = vsel %vm1229, %v1215, 0
        %v1309 = vsel %vm1229, %v1216, 0
        %v1312 = vsel %vm1229, %v1217, 0
        %v1315 = vsel %vm1229, %v1218, 0
        %v1318 = vsel %vm1229, %v1219, 0
        %v1321 = vsel %vm1229, %v1220, 0
        %v1324 = vsel %vm1229, %v1221, 0
        %1326 = vmatpush.msra.mxu0 0.0
        %1327 = vmatpush.msra.mxu0 0.0
        %1328 = vmatpush.msra.mxu0 0.0
        %1329 = vmatpush.msra.mxu0 0.0
        %1330 = vmatpush.msra.mxu0 0.0
        %1331 = vmatpush.msra.mxu0 0.0
        %1332 = vmatpush.msra.mxu0 0.0
        %1333 = vmatpush.msra.mxu0 0.0
        %1334 = vmatpush.msra.mxu0 0.0
        %1335 = vmatpush.msra.mxu0 0.0
        %1336 = vmatpush.msra.mxu0 0.0
        %1337 = vmatpush.msra.mxu0 0.0
        %1338 = vmatpush.msra.mxu0 0.0
        %1339 = vmatpush.msra.mxu0 %v1224
        %1340 = vmatpush.msra.mxu0 %v1223
        %1341 = vmatpush.msra.mxu0 %v1222
        %1342 = vmatmul.f32.gmra.mxu0 %v1231
        %v1343 = vpop.f32.mrf.mxu0
        %v1344 = vadd.f32 %v1227, %v1343
        %1345 = vmatmul.f32.gmra.mxu0 %v1234
        %v1346 = vpop.f32.mrf.mxu0
        %v1347 = vadd.f32 %v1227, %v1346
        %1348 = vmatmul.f32.gmra.mxu0 %v1237
        %v1349 = vpop.f32.mrf.mxu0
        %v1350 = vadd.f32 %v1227, %v1349
        %1351 = vmatmul.f32.gmra.mxu0 %v1240
        %v1352 = vpop.f32.mrf.mxu0
        %v1353 = vadd.f32 %v1227, %v1352
        %1354 = vmatmul.f32.gmra.mxu0 %v1243
        %v1355 = vpop.f32.mrf.mxu0
        %v1356 = vadd.f32 %v1227, %v1355
        %1357 = vmatmul.f32.gmra.mxu0 %v1246
        %v1358 = vpop.f32.mrf.mxu0
        %v1359 = vadd.f32 %v1227, %v1358
        %1360 = vmatmul.f32.gmra.mxu0 %v1249
        %v1361 = vpop.f32.mrf.mxu0
        %v1362 = vadd.f32 %v1227, %v1361
        %1363 = vmatmul.f32.gmra.mxu0 %v1252
        %v1364 = vpop.f32.mrf.mxu0
        %v1365 = vadd.f32 %v1227, %v1364
        %1366 = vmatmul.f32.gmra.mxu0 %v1255
        %v1367 = vpop.f32.mrf.mxu0
        %v1368 = vadd.f32 %v1227, %v1367
        %1369 = vmatmul.f32.gmra.mxu0 %v1258
        %v1370 = vpop.f32.mrf.mxu0
        %v1371 = vadd.f32 %v1227, %v1370
        %1372 = vmatmul.f32.gmra.mxu0 %v1261
        %v1373 = vpop.f32.mrf.mxu0
        %v1374 = vadd.f32 %v1227, %v1373
        %1375 = vmatmul.f32.gmra.mxu0 %v1264
        %v1376 = vpop.f32.mrf.mxu0
        %v1377 = vadd.f32 %v1227, %v1376
        %1378 = vmatmul.f32.gmra.mxu0 %v1267
        %v1379 = vpop.f32.mrf.mxu0
        %v1380 = vadd.f32 %v1227, %v1379
        %1381 = vmatmul.f32.gmra.mxu0 %v1270
        %v1382 = vpop.f32.mrf.mxu0
        %v1383 = vadd.f32 %v1227, %v1382
        %1384 = vmatmul.f32.gmra.mxu0 %v1273
        %v1385 = vpop.f32.mrf.mxu0
        %v1386 = vadd.f32 %v1227, %v1385
        %1387 = vmatmul.f32.gmra.mxu0 %v1276
        %v1388 = vpop.f32.mrf.mxu0
        %v1389 = vadd.f32 %v1227, %v1388
        %1390 = vmatmul.f32.gmra.mxu0 %v1279
        %v1391 = vpop.f32.mrf.mxu0
        %v1392 = vadd.f32 %v1227, %v1391
        %1393 = vmatmul.f32.gmra.mxu0 %v1282
        %v1394 = vpop.f32.mrf.mxu0
        %v1395 = vadd.f32 %v1227, %v1394
        %1396 = vmatmul.f32.gmra.mxu0 %v1285
        %v1397 = vpop.f32.mrf.mxu0
        %v1398 = vadd.f32 %v1227, %v1397
        %1399 = vmatmul.f32.gmra.mxu0 %v1288
        %v1400 = vpop.f32.mrf.mxu0
        %v1401 = vadd.f32 %v1227, %v1400
        %1402 = vmatmul.f32.gmra.mxu0 %v1291
        %v1403 = vpop.f32.mrf.mxu0
        %v1404 = vadd.f32 %v1227, %v1403
        %1405 = vmatmul.f32.gmra.mxu0 %v1294
        %v1406 = vpop.f32.mrf.mxu0
        %v1407 = vadd.f32 %v1227, %v1406
        %1408 = vmatmul.f32.gmra.mxu0 %v1297
        %v1409 = vpop.f32.mrf.mxu0
        %v1410 = vadd.f32 %v1227, %v1409
        %1411 = vmatmul.f32.gmra.mxu0 %v1300
        %v1412 = vpop.f32.mrf.mxu0
        %v1413 = vadd.f32 %v1227, %v1412
        %1414 = vmatmul.f32.gmra.mxu0 %v1303
        %v1415 = vpop.f32.mrf.mxu0
        %v1416 = vadd.f32 %v1227, %v1415
        %1417 = vmatmul.f32.gmra.mxu0 %v1306
        %v1418 = vpop.f32.mrf.mxu0
        %v1419 = vadd.f32 %v1227, %v1418
        %1420 = vmatmul.f32.gmra.mxu0 %v1309
        %v1421 = vpop.f32.mrf.mxu0
        %v1422 = vadd.f32 %v1227, %v1421
        %1423 = vmatmul.f32.gmra.mxu0 %v1312
        %v1424 = vpop.f32.mrf.mxu0
        %v1425 = vadd.f32 %v1227, %v1424
        %1426 = vmatmul.f32.gmra.mxu0 %v1315
        %v1427 = vpop.f32.mrf.mxu0
        %v1428 = vadd.f32 %v1227, %v1427
        %1429 = vmatmul.f32.gmra.mxu0 %v1318
        %v1430 = vpop.f32.mrf.mxu0
        %v1431 = vadd.f32 %v1227, %v1430
        %1432 = vmatmul.f32.gmra.mxu0 %v1321
        %v1433 = vpop.f32.mrf.mxu0
        %v1434 = vadd.f32 %v1227, %v1433
        %1435 = vmatmul.f32.gmra.mxu0 %v1324
        %v1436 = vpop.f32.mrf.mxu0
        %v1437 = vadd.f32 %v1227, %v1436
        %1438 = vdwg.mxu0
        %1439 = vst [vmem:[%s267] sm:$0xff] %v1344
        %1440 = vst [vmem:[%s267 + $0x8] sm:$0xff] %v1347
        %1441 = vst [vmem:[%s267 + $0x10] sm:$0xff] %v1350
        %1442 = vst [vmem:[%s267 + $0x18] sm:$0xff] %v1353
        %1443 = vst [vmem:[%s267 + $0x20] sm:$0xff] %v1356
        %1444 = vst [vmem:[%s267 + $0x28] sm:$0xff] %v1359
        %1445 = vst [vmem:[%s267 + $0x30] sm:$0xff] %v1362
        %1446 = vst [vmem:[%s267 + $0x38] sm:$0xff] %v1365
        %1447 = vst [vmem:[%s267 + $0x40] sm:$0xff] %v1368
        %1448 = vst [vmem:[%s267 + $0x48] sm:$0xff] %v1371
        %1449 = vst [vmem:[%s267 + $0x50] sm:$0xff] %v1374
        %1450 = vst [vmem:[%s267 + $0x58] sm:$0xff] %v1377
        %1451 = vst [vmem:[%s267 + $0x60] sm:$0xff] %v1380
        %1452 = vst [vmem:[%s267 + $0x68] sm:$0xff] %v1383
        %1453 = vst [vmem:[%s267 + $0x70] sm:$0xff] %v1386
        %1454 = vst [vmem:[%s267 + $0x78] sm:$0xff] %v1389
        %1455 = vst [vmem:[%s267 + $0x80] sm:$0xff] %v1392
        %1456 = vst [vmem:[%s267 + $0x88] sm:$0xff] %v1395
        %1457 = vst [vmem:[%s267 + $0x90] sm:$0xff] %v1398
        %1458 = vst [vmem:[%s267 + $0x98] sm:$0xff] %v1401
        %1459 = vst [vmem:[%s267 + $0xa0] sm:$0xff] %v1404
        %1460 = vst [vmem:[%s267 + $0xa8] sm:$0xff] %v1407
        %1461 = vst [vmem:[%s267 + $0xb0] sm:$0xff] %v1410
        %1462 = vst [vmem:[%s267 + $0xb8] sm:$0xff] %v1413
        %1463 = vst [vmem:[%s267 + $0xc0] sm:$0xff] %v1416
        %1464 = vst [vmem:[%s267 + $0xc8] sm:$0xff] %v1419
        %1465 = vst [vmem:[%s267 + $0xd0] sm:$0xff] %v1422
        %1466 = vst [vmem:[%s267 + $0xd8] sm:$0xff] %v1425
        %1467 = vst [vmem:[%s267 + $0xe0] sm:$0xff] %v1428
        %1468 = vst [vmem:[%s267 + $0xe8] sm:$0xff] %v1431
        %1469 = vst [vmem:[%s267 + $0xf0] sm:$0xff] %v1434
        %1470 = vst [vmem:[%s267 + $0xf8] sm:$0xff] %v1437
        %s1471 = sand.u32 %s142, 1
        %s1472 = scalar_lea.sflag [#allocation3], %s1471
        %s1473 = sand.u32 %s142, 1
        %s1474 = smul.addr %s1473, 256
        %s1475 = scalar_lea.vmem [#allocation2], %s1474
        // Predicated region
        $region37: #{tpu_custom_call.1} parent=35 // pred_check
          %p1476 = pneg %p152
        $region38: #{tpu_custom_call.1} parent=35 // pred_check_branch
          %1478 = sbr.rel (%p1476) target = $region40
        $region39: #{tpu_custom_call.1} parent=35 // pred_region
          %s1479 = smul.u32 16, %s23
          %1481 = vsyncadd %s1472, 0
          %s1482 = smul.addr %s1479, 2
          %s1483 = smul.addr %s22, 32
          %s1484 = sadd.s32 %s1482, %s1483
          %s1485 = smul.addr %s1484, 8
          %s1486 = scalar_lea.hbm %s4, %s1485
          %s1487 = sshll.u32 %s1475, 4
          %s1488 = int_to_ptr.vmem [resolvable:$true] %s1487
          %s1489 = sshll.u32 %s1486, 4
          %s1490 = int_to_ptr.hbm [resolvable:$true] %s1489
          %1495 = dma.vmem_to_hbm [thread:$0]  %s1488, 4096, %s1490, %s1472, 128, 128, 8
        $region40: #{tpu_custom_call.1} parent=35 // pred_fallthru
          _
      $region36: #{tpu_custom_call.1} parent=5 // pred_fallthru
        _
      %p1496 = scmp.le.s32.totalorder 2, %s13
      // Predicated region
      $region41: #{tpu_custom_call.1} parent=5 // pred_check
        %p1497 = pneg %p1496
      $region42: #{tpu_custom_call.1} parent=5 // pred_check_branch
        %1499 = sbr.rel (%p1497) target = $region44
      $region43: #{tpu_custom_call.1} parent=5 // pred_region
        %s1500 = ssub.s32 %s13, 2
        // Predicated region
        $region45: #{tpu_custom_call.1} parent=43 // pred_check
          %p1501 = pneg %p158
        $region46: #{tpu_custom_call.1} parent=43 // pred_check_branch
          %1503 = sbr.rel (%p1501) target = $region48
        $region47: #{tpu_custom_call.1} parent=43 // pred_region
          %s1504 = sand.u32 %s143, 1
          %s1505 = scalar_lea.sflag [#allocation3], %s1504
          %s1506 = sand.u32 %s143, 1
          %s1507 = smul.addr %s1506, 256
          %s1508 = scalar_lea.vmem [#allocation2], %s1507
          %1510 = dma.done %s1505, 4096
        $region48: #{tpu_custom_call.1} parent=43 // pred_fallthru
          _
      $region44: #{tpu_custom_call.1} parent=5 // pred_fallthru
        _
    $region6: #{tpu_custom_call.1} parent=1 // loop_footer
      %s17 = sadd.s32 1, %s13
    $region7: #{tpu_custom_call.1} parent=1 // loop_footer_branch
      %12 = sbr.rel target = $region3
    $region8: #{tpu_custom_call.1} parent=1 // loop_exit
      _
    %1511 = vsyncpa [#allocation3], 1
    %s1512 = scalar_lea.sflag [#allocation3], 1
    %1513 = vsyncpa %s1512, 1

</llo_original>
